<compile_context>
chip_gen: v7x
topology: tpu7x:2x2x1
jax: 0.10.0
libtpu: 0.0.40
codegen_flags: <defaults>
</compile_context>

<pallas_src>
import functools

import jax
import jax.numpy as jnp
from jax.experimental import pallas as pl
from jax.experimental.pallas import tpu as pltpu

LANES = 128
DEFAULT_ROW_BLOCK = 8192      # rows per grid step -> 4 MiB f32 per input block


def _round_up(x, m):
    return (x + m - 1) // m * m


def _default_num_splits() -> int:
    """2 grid splits only on two-TensorCore (v7-class) chips, else 1."""
    try:
        kind = jax.devices()[0].device_kind.lower()
    except Exception:
        return 1
    return 2 if "v7" in kind else 1


def _loss_kernel(pd_ref, p_ref, out_ref, acc_ref, *,
                 robust_fine: bool, margin: float, n_total: int,
                 block_rows: int, steps_per_split: int, multi_split: bool):
    if multi_split:
        split = pl.program_id(0)
        step = pl.program_id(1)
        last_step = pl.num_programs(1) - 1
    else:
        split = 0
        step = pl.program_id(0)
        last_step = pl.num_programs(0) - 1

    @pl.when(step == 0)
    def _init():
        acc_ref[...] = jnp.zeros_like(acc_ref)

    pd = pd_ref[...].astype(jnp.float32)
    p = p_ref[...].astype(jnp.float32)

    clamp = jnp.maximum(margin - pd, 0.0)
    neg = clamp * clamp
    if robust_fine:
        # max(sqrt(d)*(m-d), 0)^2 == d * max(m-d, 0)^2 for d >= 0 (skips sqrt).
        neg = (pd * (1.0 / margin)) * neg
    loss = neg + p * (pd * pd - neg)          # == p*d^2 + (1-p)*neg

    block_elems = block_rows * LANES
    logical_block = split * steps_per_split + step
    base = logical_block * block_elems        # int32; fine for n < 2**31
    # True for the tail block AND for clamped duplicate "overhang" blocks
    # (those have base >= n_total, so every element masks to zero).
    needs_mask = base > (n_total - block_elems)

    @pl.when(jnp.logical_not(needs_mask))
    def _accumulate_full():
        # Common path: pure full-vreg adds + one tiny sublane reduce per step.
        acc_ref[...] += jnp.sum(loss, axis=0, keepdims=True)

    @pl.when(needs_mask)
    def _accumulate_masked():
        row = jax.lax.broadcasted_iota(jnp.int32, (block_rows, LANES), 0)
        lane = jax.lax.broadcasted_iota(jnp.int32, (block_rows, LANES), 1)
        limit = n_total - base                # may be <= 0 for overhang blocks
        masked = jnp.where(row * LANES + lane < limit, loss, 0.0)
        acc_ref[...] += jnp.sum(masked, axis=0, keepdims=True)

    @pl.when(step == last_step)
    def _finalize():
        out_ref[0] = acc_ref[...]


def noise_robust_loss(pair_dist, P, margin, use_robust_loss, start_fine,
                      *, row_block: int = DEFAULT_ROW_BLOCK, num_splits=None):
    """Pallas TPU implementation of NoiseRobustLoss.forward.

    pair_dist: (N,) distances.  P: (N,) labels in any numeric dtype (narrow
    dtypes such as bf16/int8 are streamed as-is and upcast in-kernel).
    margin: Python float.  use_robust_loss / start_fine: static Python values.
    Returns a scalar float32.
    """
    pair_dist = jnp.asarray(pair_dist)
    P = jnp.asarray(P)
    n = int(P.shape[0])

    if num_splits is None:
        num_splits = _default_num_splits()
    num_splits = max(1, int(num_splits))

    # Slab view: rows padded to a multiple of 32 (covers f32/bf16/int8 tile
    # rules).  Pad values are masked in-kernel so zeros are irrelevant.
    rows = _round_up(pl.cdiv(n, LANES), 32)
    padded = rows * LANES

    def as_slab(x):
        if padded != n:
            x = jnp.pad(x, (0, padded - n))
        return x.reshape(rows, LANES)          # free (contiguous) reshape

    pd2 = as_slab(pair_dist)
    p2 = as_slab(P)

    block_rows = min(_round_up(int(row_block), 32), rows)
    total_blocks = pl.cdiv(rows, block_rows)
    if total_blocks < num_splits:              # too little work to split
        num_splits = 1
    spc = pl.cdiv(total_blocks, num_splits)    # reduction steps per split
    multi_split = num_splits > 1

    robust_fine = bool(int(use_robust_loss) == 1 and bool(start_fine))
    kernel = functools.partial(
        _loss_kernel, robust_fine=robust_fine, margin=float(margin),
        n_total=n, block_rows=int(block_rows), steps_per_split=int(spc),
        multi_split=multi_split)

    if multi_split:
        grid = (num_splits, spc)

        def in_map(c, i):
            # Clamp so an over-hanging block (odd block count) stays in range;
            # its contribution is masked to zero inside the kernel.
            return (jnp.minimum(c * spc + i, total_blocks - 1), 0)

        out_map = lambda c, i: (c, 0, 0)
        # v7x only: genuinely shard the leading axis across both TensorCores.
        core_parallel = getattr(pltpu, "CORE_PARALLEL", "parallel")
        dim_sem = (core_parallel, "arbitrary")
    else:
        grid = (spc,)
        in_map = lambda i: (i, 0)
        out_map = lambda i: (0, 0, 0)
        dim_sem = ("arbitrary",)

    partials = pl.pallas_call(
        kernel,
        out_shape=jax.ShapeDtypeStruct((num_splits, 1, LANES), jnp.float32),
        grid_spec=pltpu.PrefetchScalarGridSpec(
            num_scalar_prefetch=0,
            grid=grid,
            in_specs=[
                pl.BlockSpec((block_rows, LANES), in_map),   # pair_dist
                pl.BlockSpec((block_rows, LANES), in_map),   # P
            ],
            out_specs=pl.BlockSpec((1, 1, LANES), out_map),
            scratch_shapes=[pltpu.VMEM((1, LANES), jnp.float32)],
        ),
        compiler_params=pltpu.CompilerParams(
            dimension_semantics=dim_sem,
            vmem_limit_bytes=32 * 1024 * 1024),
    )(pd2, p2)

    return jnp.sum(partials) / (2.0 * n)


def _reference(pair_dist, P, margin, use_robust_loss, start_fine):
    pd = jnp.asarray(pair_dist, jnp.float32)
    p = jnp.asarray(P, jnp.float32)
    dist_sq = pd * pd
    if use_robust_loss == 1 and start_fine:
        neg = (1.0 / margin) * jnp.square(
            jnp.maximum(jnp.sqrt(pd) * (margin - pd), 0.0))
    else:
        neg = jnp.square(jnp.maximum(margin - pd, 0.0))
    loss = p * dist_sq + (1.0 - p) * neg
    return jnp.sum(loss) / (2.0 * p.shape[0])


if __name__ == "__main__":
    key = jax.random.PRNGKey(0)
    k1, k2 = jax.random.split(key)

    margin = 1.5
    ok = True
    # (n, row_block, P dtype): ragged tail / exact block fit / multi-block
    # reduction with a narrow label dtype.
    configs = [
        (2000, DEFAULT_ROW_BLOCK, jnp.float32),
        (4096, DEFAULT_ROW_BLOCK, jnp.float32),
        (33000, 64, jnp.bfloat16),
    ]
    for n, row_block, p_dtype in configs:
        pd = jax.random.uniform(k1, (n,), jnp.float32, 0.0, 3.0)
        P = (jax.random.uniform(k2, (n,)) > 0.5).astype(p_dtype)
        for use_robust_loss, start_fine in [(1, True), (1, False), (0, True)]:
            got = noise_robust_loss(pd, P, margin, use_robust_loss, start_fine,
                                    row_block=row_block)
            jax.block_until_ready(got)
            want = _reference(pd, P, margin, use_robust_loss, start_fine)
            if not jnp.allclose(got, want, rtol=5e-4, atol=1e-6):
                ok = False
                print("MISMATCH", n, row_block, str(p_dtype),
                      use_robust_loss, start_fine, float(got), float(want))

    if ok:
        print("KERNEL_OK")
</pallas_src>

<mosaic_0001>
module attributes {stable_mosaic.version = 11 : i64} {
  func.func @_loss_kernel(%arg0: i32, %arg1: memref<32x128xf32, #tpu.memory_space<vmem>>, %arg2: memref<32x128xf32, #tpu.memory_space<vmem>>, %arg3: memref<1x1x128xf32, #tpu.memory_space<vmem>>, %arg4: memref<1x128xf32, #tpu.memory_space<vmem>>) attributes {dimension_semantics = [#tpu.dimension_semantics<arbitrary>], iteration_bounds = array<i64: 1>, scalar_prefetch = 0 : i64, scratch_operands = 1 : i64, tpu.core_type = #tpu.core_type<tc>, window_params = [{transform_indices = @transform_0, window_bounds = array<i64: 32, 128>}, {transform_indices = @transform_1, window_bounds = array<i64: 32, 128>}, {pipeline_mode = #tpu.pipeline_mode<synchronous>, transform_indices = @transform_2, window_bounds = array<i64: 1, 1, 128>}]} {
    %c0_i32 = arith.constant 0 : i32
    %0 = arith.cmpi eq, %arg0, %c0_i32 : i32
    %1 = arith.extui %0 : i1 to i32
    %c0_i32_0 = arith.constant 0 : i32
    %2 = arith.cmpi ne, %1, %c0_i32_0 : i32
    scf.if %2 {
      %cst_11 = arith.constant 0.000000e+00 : f32
      %28 = vector.broadcast %cst_11 : f32 to vector<1x128xf32>
      %c0_12 = arith.constant 0 : index
      %c0_13 = arith.constant 0 : index
      %29 = vector.load %arg4[%c0_12, %c0_13] : memref<1x128xf32, #tpu.memory_space<vmem>>, vector<1x128xf32>
      tpu.vector_store %arg4[%c0_12, %c0_13], %28 {strides = array<i32>} : memref<1x128xf32, #tpu.memory_space<vmem>>, vector<1x128xf32>,
    } else {
    }
    %c0 = arith.constant 0 : index
    %c0_1 = arith.constant 0 : index
    %3 = vector.load %arg1[%c0, %c0_1] : memref<32x128xf32, #tpu.memory_space<vmem>>, vector<32x128xf32>
    %c0_2 = arith.constant 0 : index
    %c0_3 = arith.constant 0 : index
    %4 = vector.load %arg2[%c0_2, %c0_3] : memref<32x128xf32, #tpu.memory_space<vmem>>, vector<32x128xf32>
    %cst = arith.constant 1.500000e+00 : f32
    %5 = vector.broadcast %cst : f32 to vector<32x128xf32>
    %6 = arith.subf %5, %3 : vector<32x128xf32>
    %cst_4 = arith.constant 0.000000e+00 : f32
    %7 = vector.broadcast %cst_4 : f32 to vector<32x128xf32>
    %8 = arith.maximumf %6, %7 : vector<32x128xf32>
    %9 = arith.mulf %8, %8 : vector<32x128xf32>
    %cst_5 = arith.constant 0.666666686 : f32
    %10 = vector.broadcast %cst_5 : f32 to vector<32x128xf32>
    %11 = arith.mulf %3, %10 : vector<32x128xf32>
    %12 = arith.mulf %11, %9 : vector<32x128xf32>
    %13 = arith.mulf %3, %3 : vector<32x128xf32>
    %14 = arith.subf %13, %12 : vector<32x128xf32>
    %15 = arith.mulf %4, %14 : vector<32x128xf32>
    %16 = arith.addf %12, %15 : vector<32x128xf32>
    %c0_i32_6 = arith.constant 0 : i32
    %17 = arith.addi %c0_i32_6, %arg0 : i32
    %c4096_i32 = arith.constant 4096 : i32
    %18 = arith.muli %17, %c4096_i32 : i32
    %c-2096_i32 = arith.constant -2096 : i32
    %19 = arith.cmpi sgt, %18, %c-2096_i32 : i32
    %true = arith.constant true
    %20 = arith.xori %19, %true : i1
    %21 = arith.extui %20 : i1 to i32
    %c0_i32_7 = arith.constant 0 : i32
    %22 = arith.cmpi ne, %21, %c0_i32_7 : i32
    scf.if %22 {
      %c0_11 = arith.constant 0 : index
      %c0_12 = arith.constant 0 : index
      %28 = vector.load %arg4[%c0_11, %c0_12] : memref<1x128xf32, #tpu.memory_space<vmem>>, vector<1x128xf32>
      %cst_13 = arith.constant dense<0.000000e+00> : vector<128xf32>
      %29 = vector.multi_reduction <add>, %16, %cst_13 [0] : vector<32x128xf32> to vector<128xf32>
      %30 = vector.shape_cast %29 : vector<128xf32> to vector<1x128xf32>
      %31 = arith.addf %28, %30 : vector<1x128xf32>
      %c0_14 = arith.constant 0 : index
      %c0_15 = arith.constant 0 : index
      %32 = vector.load %arg4[%c0_14, %c0_15] : memref<1x128xf32, #tpu.memory_space<vmem>>, vector<1x128xf32>
      tpu.vector_store %arg4[%c0_14, %c0_15], %31 {strides = array<i32>} : memref<1x128xf32, #tpu.memory_space<vmem>>, vector<1x128xf32>,
    } else {
    }
    %23 = arith.extui %19 : i1 to i32
    %c0_i32_8 = arith.constant 0 : i32
    %24 = arith.cmpi ne, %23, %c0_i32_8 : i32
    scf.if %24 {
      %28 = tpu.iota {dimensions = array<i32: 0>} : vector<32x128xi32>
      %29 = tpu.iota {dimensions = array<i32: 1>} : vector<32x128xi32>
      %c2000_i32 = arith.constant 2000 : i32
      %30 = arith.subi %c2000_i32, %18 : i32
      %c128_i32 = arith.constant 128 : i32
      %31 = vector.broadcast %c128_i32 : i32 to vector<32x128xi32>
      %32 = arith.muli %28, %31 : vector<32x128xi32>
      %33 = arith.addi %32, %29 : vector<32x128xi32>
      %34 = vector.broadcast %30 : i32 to vector<32x128xi32>
      %35 = arith.cmpi slt, %33, %34 : vector<32x128xi32>
      %cst_11 = arith.constant 0.000000e+00 : f32
      %36 = vector.broadcast %cst_11 : f32 to vector<32x128xf32>
      %37 = arith.select %35, %16, %36 : vector<32x128xi1>, vector<32x128xf32>
      %c0_12 = arith.constant 0 : index
      %c0_13 = arith.constant 0 : index
      %38 = vector.load %arg4[%c0_12, %c0_13] : memref<1x128xf32, #tpu.memory_space<vmem>>, vector<1x128xf32>
      %cst_14 = arith.constant dense<0.000000e+00> : vector<128xf32>
      %39 = vector.multi_reduction <add>, %37, %cst_14 [0] : vector<32x128xf32> to vector<128xf32>
      %40 = vector.shape_cast %39 : vector<128xf32> to vector<1x128xf32>
      %41 = arith.addf %38, %40 : vector<1x128xf32>
      %c0_15 = arith.constant 0 : index
      %c0_16 = arith.constant 0 : index
      %42 = vector.load %arg4[%c0_15, %c0_16] : memref<1x128xf32, #tpu.memory_space<vmem>>, vector<1x128xf32>
      tpu.vector_store %arg4[%c0_15, %c0_16], %41 {strides = array<i32>} : memref<1x128xf32, #tpu.memory_space<vmem>>, vector<1x128xf32>,
    } else {
    }
    %c0_i32_9 = arith.constant 0 : i32
    %25 = arith.cmpi eq, %arg0, %c0_i32_9 : i32
    %26 = arith.extui %25 : i1 to i32
    %c0_i32_10 = arith.constant 0 : i32
    %27 = arith.cmpi ne, %26, %c0_i32_10 : i32
    scf.if %27 {
      %c0_11 = arith.constant 0 : index
      %c0_12 = arith.constant 0 : index
      %28 = vector.load %arg4[%c0_11, %c0_12] : memref<1x128xf32, #tpu.memory_space<vmem>>, vector<1x128xf32>
      %c0_13 = arith.constant 0 : index
      %c0_14 = arith.constant 0 : index
      %c0_15 = arith.constant 0 : index
      %29 = vector.load %arg3[%c0_13, %c0_14, %c0_15] : memref<1x1x128xf32, #tpu.memory_space<vmem>>, vector<1x1x128xf32>
      %30 = vector.shape_cast %29 : vector<1x1x128xf32> to vector<1x128xf32>
      %31 = vector.shape_cast %28 : vector<1x128xf32> to vector<1x1x128xf32>
      tpu.vector_store %arg3[%c0_13, %c0_14, %c0_15], %31 {strides = array<i32>} : memref<1x1x128xf32, #tpu.memory_space<vmem>>, vector<1x1x128xf32>,
    } else {
    }
    return
  }
  func.func @transform_0(%arg0: i32) -> (i32, i32) {
    %c0_i32 = arith.constant 0 : i32
    %c0_i32_0 = arith.constant 0 : i32
    return %arg0, %c0_i32 : i32, i32
  }
  func.func @transform_1(%arg0: i32) -> (i32, i32) {
    %c0_i32 = arith.constant 0 : i32
    %c0_i32_0 = arith.constant 0 : i32
    return %arg0, %c0_i32 : i32, i32
  }
  func.func @transform_2(%arg0: i32) -> (i32, i32, i32) {
    %c0_i32 = arith.constant 0 : i32
    %c0_i32_0 = arith.constant 0 : i32
    %c0_i32_1 = arith.constant 0 : i32
    %c0_i32_2 = arith.constant 0 : i32
    return %c0_i32, %c0_i32_0, %c0_i32_1 : i32, i32, i32
  }
}

</mosaic_0001>

<llo_original>
// kernel: tpu_custom_call.1
$region0: #{tpu_custom_call.1}
  #allocation0 [shape = 'u32[]', space=smem, size = 0x4, offset = 0x4, fixed_abs, tag = 'smem constant byte address 0x4 - core index']
  #allocation1 [shape = 'u32[144,128]{1,0:T(1,128)}', space=vmem, size = 0x12000, scoped, tag = 'internal scratch']
  #allocation2 [shape = 'f32[1,128]{1,0:T(1,128)}', space=vmem, size = 0x200, scoped, tag = 'scratch operand']
  %s0 = inlined_call_operand.hbm [shape: f32[32,128], index: 0, kind: input, shape index: {}]
  %s1 = inlined_call_operand.hbm [shape: f32[32,128], index: 1, kind: input, shape index: {}]
  %s2 = inlined_call_operand.hbm [shape: f32[1,1,128], index: 2, kind: output, shape index: {}]
  %s3 = sld [smem:[#allocation0]]
  $region42: #{tpu_custom_call.1} parent=0
    _
  %s5 = ssub.s32 1, %s3
  %s6 = scalar_select 0, %s5, %s3
  $region1: #{tpu_custom_call.1} parent=0
    #allocation3 [shape = 'u8[16384]{0}', space=vmem, size = 0x4000, scoped, tag = 'input window, operand 0, single buffered']
    #allocation4 [shape = 's32[1]{0}', space=sflag, size = 0x4, scoped, tag = 'scoped memory for tpu_custom_call.1']
    #allocation5 [shape = 's32[1]{0}', space=sflag, size = 0x4, scoped, tag = 'scoped memory for tpu_custom_call.1']
    #allocation6 [shape = 'u8[16384]{0}', space=vmem, size = 0x4000, scoped, tag = 'input window, operand 1, single buffered']
    #allocation7 [shape = 's32[1]{0}', space=sflag, size = 0x4, scoped, tag = 'scoped memory for tpu_custom_call.1']
    #allocation8 [shape = 'u8[512]{0}', space=vmem, size = 0x400, scoped, tag = 'output window, operand 0, single buffered']
    %7 = vsyncpa [#allocation4], 0
    %8 = vsyncpa [#allocation7], 0
    %9 = vsyncpa [#allocation5], 0
    // Predicated region
    $region2: #{tpu_custom_call.1} parent=1 // pred_check
      _
    $region3: #{tpu_custom_call.1} parent=1 // pred_check_branch
      %11 = sbr.rel (0) target = $region5
    $region4: #{tpu_custom_call.1} parent=1 // pred_region
      %s13 = ssub.s32 512, 512
      %14 = vsyncadd [#allocation4], %s13
      %s15 = sshll.u32 [#allocation3], 4
      %s16 = int_to_ptr.vmem [resolvable:$true] %s15
      %21 = dma.hbm_to_vmem [thread:$0]  %s0, 512, %s16, [#allocation4], 128, 128, 8
    $region5: #{tpu_custom_call.1} parent=1 // pred_fallthru
      _
    // Predicated region
    $region6: #{tpu_custom_call.1} parent=1 // pred_check
      _
    $region7: #{tpu_custom_call.1} parent=1 // pred_check_branch
      %23 = sbr.rel (0) target = $region9
    $region8: #{tpu_custom_call.1} parent=1 // pred_region
      %s25 = ssub.s32 512, 512
      %26 = vsyncadd [#allocation7], %s25
      %s27 = sshll.u32 [#allocation6], 4
      %s28 = int_to_ptr.vmem [resolvable:$true] %s27
      %33 = dma.hbm_to_vmem [thread:$0]  %s1, 512, %s28, [#allocation7], 128, 128, 8
    $region9: #{tpu_custom_call.1} parent=1 // pred_fallthru
      _
    // Predicated region
    $region10: #{tpu_custom_call.1} parent=1 // pred_check
      _
    $region11: #{tpu_custom_call.1} parent=1 // pred_check_branch
      %35 = sbr.rel (0) target = $region13
    $region12: #{tpu_custom_call.1} parent=1 // pred_region
      %36 = dma.done [#allocation4], 512
    $region13: #{tpu_custom_call.1} parent=1 // pred_fallthru
      _
    // Predicated region
    $region14: #{tpu_custom_call.1} parent=1 // pred_check
      _
    $region15: #{tpu_custom_call.1} parent=1 // pred_check_branch
      %38 = sbr.rel (0) target = $region17
    $region16: #{tpu_custom_call.1} parent=1 // pred_region
      %39 = dma.done [#allocation7], 512
    $region17: #{tpu_custom_call.1} parent=1 // pred_fallthru
      _
    %p40 = scmp.eq.s32.totalorder 0, 0
    // Predicated region
    $region18: #{tpu_custom_call.1} parent=1 // pred_check
      %p41 = pneg %p40
    $region19: #{tpu_custom_call.1} parent=1 // pred_check_branch
      %43 = sbr.rel (%p41) target = $region21
    $region20: #{tpu_custom_call.1} parent=1 // pred_region
      %44 = vst [vmem:[#allocation2] sm:$0x1] 0.0
    $region21: #{tpu_custom_call.1} parent=1 // pred_fallthru
      _
    %v45 = vld [vmem:[#allocation3] sm:$0xff]
    %v46 = vld [vmem:[#allocation3 + $0x8] sm:$0xff]
    %v47 = vld [vmem:[#allocation3 + $0x10] sm:$0xff]
    %v48 = vld [vmem:[#allocation3 + $0x18] sm:$0xff]
    %v49 = vld [vmem:[#allocation6] sm:$0xff]
    %v50 = vld [vmem:[#allocation6 + $0x8] sm:$0xff]
    %v51 = vld [vmem:[#allocation6 + $0x10] sm:$0xff]
    %v52 = vld [vmem:[#allocation6 + $0x18] sm:$0xff]
    %v53 = vsub.f32 1.5, %v45
    %v54 = vsub.f32 1.5, %v46
    %v55 = vsub.f32 1.5, %v47
    %v56 = vsub.f32 1.5, %v48
    %v57 = vmax.f32 %v53, 0.0
    %v58 = vmax.f32 %v54, 0.0
    %v59 = vmax.f32 %v55, 0.0
    %v60 = vmax.f32 %v56, 0.0
    %v61 = vmul.f32 %v57, %v57
    %v62 = vmul.f32 %v58, %v58
    %v63 = vmul.f32 %v59, %v59
    %v64 = vmul.f32 %v60, %v60
    %v65 = vmul.f32 %v45, 0.6666667
    %v66 = vmul.f32 %v46, 0.6666667
    %v67 = vmul.f32 %v47, 0.6666667
    %v68 = vmul.f32 %v48, 0.6666667
    %v69 = vmul.f32 %v65, %v61
    %v70 = vmul.f32 %v66, %v62
    %v71 = vmul.f32 %v67, %v63
    %v72 = vmul.f32 %v68, %v64
    %v73 = vmul.f32 %v45, %v45
    %v74 = vmul.f32 %v46, %v46
    %v75 = vmul.f32 %v47, %v47
    %v76 = vmul.f32 %v48, %v48
    %v77 = vsub.f32 %v73, %v69
    %v78 = vsub.f32 %v74, %v70
    %v79 = vsub.f32 %v75, %v71
    %v80 = vsub.f32 %v76, %v72
    %v81 = vmul.f32 %v49, %v77
    %v82 = vmul.f32 %v50, %v78
    %v83 = vmul.f32 %v51, %v79
    %v84 = vmul.f32 %v52, %v80
    %v85 = vadd.f32 %v69, %v81
    %v86 = vadd.f32 %v70, %v82
    %v87 = vadd.f32 %v71, %v83
    %v88 = vadd.f32 %v72, %v84
    %s89 = smul.u32 0, 4096
    %p90 = scmp.gt.s32.totalorder %s89, 4294965200
    %p91 = scmp.le.s32.totalorder %s89, 4294965200
    // Predicated region
    $region22: #{tpu_custom_call.1} parent=1 // pred_check
      %p92 = pneg %p91
    $region23: #{tpu_custom_call.1} parent=1 // pred_check_branch
      %94 = sbr.rel (%p92) target = $region25
    $region24: #{tpu_custom_call.1} parent=1 // pred_region
      %v95 = vld [vmem:[#allocation2] sm:$0x1]
      %v96 = vadd.f32 %v85, %v86
      %v97 = vadd.f32 %v96, %v87
      %v98 = vadd.f32 %v97, %v88
      %v99 = vrot.slane %v98, 4
      %v100 = vadd.f32 %v98, %v99
      %v101 = vrot.slane %v100, 2
      %v102 = vadd.f32 %v100, %v101
      %v103 = vrot.slane %v102, 1
      %v104 = vadd.f32 %v102, %v103
      %v105 = vadd.f32 %v95, %v104
      %106 = vst [vmem:[#allocation2] sm:$0x1] %v105
    $region25: #{tpu_custom_call.1} parent=1 // pred_fallthru
      _
    // Predicated region
    $region26: #{tpu_custom_call.1} parent=1 // pred_check
      %p107 = pneg %p90
    $region27: #{tpu_custom_call.1} parent=1 // pred_check_branch
      %109 = sbr.rel (%p107) target = $region29
    $region28: #{tpu_custom_call.1} parent=1 // pred_region
      %v110 = vlaneseq
      %v111 = vshrl.u32 %v110, 7
      %v112 = vadd.s32 %v111, 8
      %v113 = vadd.s32 %v111, 16
      %v114 = vadd.s32 %v111, 24
      %v115 = vlaneseq
      %v116 = vand.u32 %v115, 127
      %s117 = ssub.s32 2000, %s89
      %v118 = vmul.u32 %v111, 128
      %v119 = vmul.u32 %v112, 128
      %v120 = vmul.u32 %v113, 128
      %v121 = vmul.u32 %v114, 128
      %v122 = vadd.s32 %v118, %v116
      %v123 = vadd.s32 %v119, %v116
      %v124 = vadd.s32 %v120, %v116
      %v125 = vadd.s32 %v121, %v116
      %v126 = vstv %s117
      %vm127 = vcmp.lt.s32.totalorder %v122, %v126
      %vm128 = vcmp.lt.s32.totalorder %v123, %v126
      %vm129 = vcmp.lt.s32.totalorder %v124, %v126
      %vm130 = vcmp.lt.s32.totalorder %v125, %v126
      %v131 = vsel %vm127, %v85, 0.0
      %v132 = vsel %vm128, %v86, 0.0
      %v133 = vsel %vm129, %v87, 0.0
      %v134 = vsel %vm130, %v88, 0.0
      %v135 = vld [vmem:[#allocation2] sm:$0x1]
      %v136 = vadd.f32 %v131, %v132
      %v137 = vadd.f32 %v136, %v133
      %v138 = vadd.f32 %v137, %v134
      %v139 = vrot.slane %v138, 4
      %v140 = vadd.f32 %v138, %v139
      %v141 = vrot.slane %v140, 2
      %v142 = vadd.f32 %v140, %v141
      %v143 = vrot.slane %v142, 1
      %v144 = vadd.f32 %v142, %v143
      %v145 = vadd.f32 %v135, %v144
      %146 = vst [vmem:[#allocation2] sm:$0x1] %v145
    $region29: #{tpu_custom_call.1} parent=1 // pred_fallthru
      _
    // Predicated region
    $region30: #{tpu_custom_call.1} parent=1 // pred_check
      %p147 = pneg %p40
    $region31: #{tpu_custom_call.1} parent=1 // pred_check_branch
      %149 = sbr.rel (%p147) target = $region33
    $region32: #{tpu_custom_call.1} parent=1 // pred_region
      %v150 = vld [vmem:[#allocation2] sm:$0x1]
      %151 = vst [vmem:[#allocation8] sm:$0x1] %v150
    $region33: #{tpu_custom_call.1} parent=1 // pred_fallthru
      _
    // Predicated region
    $region34: #{tpu_custom_call.1} parent=1 // pred_check
      _
    $region35: #{tpu_custom_call.1} parent=1 // pred_check_branch
      %153 = sbr.rel (0) target = $region37
    $region36: #{tpu_custom_call.1} parent=1 // pred_region
      %s155 = ssub.s32 16, 16
      %156 = vsyncadd [#allocation5], %s155
      %s158 = sshll.u32 [#allocation8], 4
      %s159 = int_to_ptr.vmem [resolvable:$true] %s158
      %161 = dma.vmem_to_hbm [thread:$0]  %s159, 16, %s2, [#allocation5]
    $region37: #{tpu_custom_call.1} parent=1 // pred_fallthru
      _
    // Predicated region
    $region38: #{tpu_custom_call.1} parent=1 // pred_check
      _
    $region39: #{tpu_custom_call.1} parent=1 // pred_check_branch
      %163 = sbr.rel (0) target = $region41
    $region40: #{tpu_custom_call.1} parent=1 // pred_region
      %164 = dma.done [#allocation5], 16
    $region41: #{tpu_custom_call.1} parent=1 // pred_fallthru
      _
    %165 = vsyncpa [#allocation4], 1
    %166 = vsyncpa [#allocation7], 1
    %167 = vsyncpa [#allocation5], 1

</llo_original>
